<compile_context>
chip_gen: v6e
topology: v6e:2x2x1
jax: 0.10.0
libtpu: 0.0.40
codegen_flags: <defaults>
</compile_context>

<pallas_src>
import functools

import jax
import jax.numpy as jnp
from jax.experimental import pallas as pl
from jax.experimental.pallas import tpu as pltpu

_NEG_BIG = -1.0e9           # additive "-inf" mask value (finite, bf16-safe)
_VMEM_LIMIT = 48 * 1024 * 1024   # <= v7x physical VMEM, raises v5e/v6e default


def _leaky_relu(x, alpha):
    # maximum(x, alpha*x) == leaky_relu for 0 < alpha < 1 (one fewer VALU op).
    return jnp.maximum(x, alpha * x)


def _elu(x):
    return jnp.where(x > 0, x, jnp.exp(x) - 1.0)


def _round_up(v, m):
    return -(-v // m) * m


# --------------------------------------------------------------------------
# Kernel 1: per-head input projection  h_all[h] = x @ W_h         (grid=(H,))
# --------------------------------------------------------------------------
def _head_project_kernel(x_ref, w_ref, h_ref):
    h = jnp.dot(x_ref[...], w_ref[0], preferred_element_type=jnp.float32)
    h_ref[0] = h.astype(h_ref.dtype)


# --------------------------------------------------------------------------
# Kernel 2: hidden-layer attention, row-tiled over adjacency rows (grid=(R,))
# --------------------------------------------------------------------------
def _hidden_attention_kernel(h_all_ref, h_blk_ref, a1_ref, a2_ref, bias_ref,
                             x2_ref, *, alpha, nheads):
    """One adjacency row block, all H heads (lax.fori_loop over heads).

    h_all_ref : (H, Np, Fo) bf16  all transformed nodes (VMEM resident)
    h_blk_ref : (H, TILE_R, Fo)   this row block's transformed nodes
    a1_ref    : (H, 1, Fo) f32    per-head attention vector, first half
    a2_ref    : (H, 1, Fo) f32    per-head attention vector, second half
    bias_ref  : (TILE_R, Np) bf16 additive adjacency mask (0 / -1e9), streamed
    x2_ref    : (H, TILE_R, Fo)   ELU'd per-head outputs (head-major "concat")
    """

    def head_body(hd, carry):
        h_all_h = h_all_ref[hd]                              # (Np, Fo) bf16
        h_blk_h = h_blk_ref[hd]                              # (TILE_R, Fo)
        a1_h = a1_ref[hd]                                    # (1, Fo) f32
        a2_h = a2_ref[hd]                                    # (1, Fo) f32

        # f1[i] = a1 . h_i  (this block's rows), f2[j] = a2 . h_j (all nodes)
        f1 = jnp.sum(h_blk_h.astype(jnp.float32) * a1_h,
                     axis=1, keepdims=True)                  # (TILE_R, 1)
        f2 = jax.lax.dot_general(a2_h.astype(jnp.bfloat16), h_all_h,
                                 (((1,), (1,)), ((), ())),
                                 preferred_element_type=jnp.float32)  # (1, Np)

        s = f1 + f2                                          # (TILE_R, Np) f32
        # e = exp(-leakyrelu(s)) restricted to edges (additive -1e9 mask),
        # exp argument in bf16 (EUP), rowsum accumulated in f32.
        arg = (-_leaky_relu(s, alpha)).astype(jnp.bfloat16) + bias_ref[...]
        e = jnp.exp(arg)                                     # bf16
        rowsum = jnp.sum(e.astype(jnp.float32), axis=1, keepdims=True)
        inv = pl.reciprocal(rowsum, approx=True)             # EUP slot
        agg = jnp.dot(e, h_all_h,
                      preferred_element_type=jnp.float32) * inv
        x2_ref[hd] = _elu(agg).astype(x2_ref.dtype)
        return carry

    jax.lax.fori_loop(0, nheads, head_body, 0)


# --------------------------------------------------------------------------
# Kernel 3: output projection  h2 = sum_h x2[h] @ W_out[h]        (grid=(H,))
#           (equivalent to torch.cat(heads, dim=1) @ W_out)
# --------------------------------------------------------------------------
def _out_project_kernel(x2_ref, w_ref, h2_ref):
    @pl.when(pl.program_id(0) == 0)
    def _():
        h2_ref[...] = jnp.zeros_like(h2_ref)

    h2_ref[...] += jnp.dot(x2_ref[0], w_ref[0],
                           preferred_element_type=jnp.float32)


# --------------------------------------------------------------------------
# Kernel 4: output-head attention + ELU + log_softmax, row-tiled  (grid=(R,))
# --------------------------------------------------------------------------
def _out_attention_kernel(h2_all_ref, h2_blk_ref, a1_ref, a2_ref, bias_ref,
                          out_ref, *, alpha, nclass):
    """h2_all (Np, Cp=128) f32 resident; bias streamed; 128-lane-dense output."""
    cp = h2_all_ref.shape[1]
    h2_all = h2_all_ref[...]                                 # (Np, Cp) f32
    h2_bf = h2_all.astype(jnp.bfloat16)
    h2_blk = h2_blk_ref[...]                                 # (TILE_R, Cp) f32
    a1 = a1_ref[...]                                         # (1, Cp) f32
    a2 = a2_ref[...]                                         # (1, Cp) f32

    f1 = jnp.sum(h2_blk * a1, axis=1, keepdims=True)         # (TILE_R, 1)
    f2 = jax.lax.dot_general(a2.astype(jnp.bfloat16), h2_bf,
                             (((1,), (1,)), ((), ())),
                             preferred_element_type=jnp.float32)   # (1, Np)

    s = f1 + f2
    arg = (-_leaky_relu(s, alpha)).astype(jnp.bfloat16) + bias_ref[...]
    e = jnp.exp(arg)                                         # bf16
    rowsum = jnp.sum(e.astype(jnp.float32), axis=1, keepdims=True)
    agg = jnp.dot(e, h2_bf, preferred_element_type=jnp.float32)
    z = _elu(agg / rowsum)          # exact division for the output head

    # mask padded class lanes, then numerically-stable log_softmax (f32)
    lane = jax.lax.broadcasted_iota(jnp.int32, (1, cp), 1)
    z = jnp.where(lane < nclass, z, _NEG_BIG)
    zmax = jnp.max(z, axis=1, keepdims=True)
    zs = z - zmax
    logp = zs - jnp.log(jnp.sum(jnp.exp(zs), axis=1, keepdims=True))
    out_ref[...] = logp.astype(out_ref.dtype)


# ------------------------------- wrapper -----------------------------------
def spgat_forward(params, x, adj, alpha, *, tile_r=256):
    """Fused SpGAT forward (eval mode). Returns (N, nclass) log-probabilities.

    tile_r: adjacency row-block size. 256-512 suits v7x (64 MiB VMEM),
            512-1024 suits v6e/v5e (128 MiB).
    """
    N, fin = x.shape
    H, _, fo = params["W_heads"].shape
    nclass = params["W_out"].shape[1]
    cp = 128                                   # lane-dense padded class width

    # ---- row padding / tile selection -------------------------------------
    n8 = _round_up(N, 8)
    tile_r = _round_up(min(tile_r, n8), 8)
    if n8 <= tile_r:
        tile_r = n8
        n_pad = n8
    else:
        n_pad = _round_up(N, tile_r)
    num_blocks = n_pad // tile_r

    # ---- input packing (wrapper-side, cheap) -------------------------------
    xp = jnp.zeros((n_pad, fin), jnp.bfloat16).at[:N].set(x.astype(jnp.bfloat16))
    adjp = jnp.zeros((n_pad, n_pad), jnp.float32).at[:N, :N].set(
        adj.astype(jnp.float32))
    # additive mask: 0 on edges, -1e9 elsewhere (bf16, half the HBM traffic)
    bias = jnp.where(adjp > 0, 0.0, _NEG_BIG).astype(jnp.bfloat16)
    if n_pad > N:
        # self-loops on padding rows keep their rowsum finite (outputs sliced off)
        pidx = jnp.arange(N, n_pad)
        bias = bias.at[pidx, pidx].set(0.0)

    w_heads = params["W_heads"].astype(jnp.bfloat16)          # (H, Fin, Fo)
    a_heads = params["a_heads"].astype(jnp.float32)           # (H, 1, 2*Fo)
    a1 = a_heads[:, :, :fo]                                   # (H, 1, Fo)
    a2 = a_heads[:, :, fo:]                                   # (H, 1, Fo)
    # output weight, head-major, classes zero-padded to 128 lanes
    w_out_hm = jnp.zeros((H, fo, cp), jnp.bfloat16).at[:, :, :nclass].set(
        params["W_out"].reshape(H, fo, nclass).astype(jnp.bfloat16))
    a_out = params["a_out"].astype(jnp.float32)               # (1, 2*nclass)
    a1o = jnp.zeros((1, cp), jnp.float32).at[:, :nclass].set(a_out[:, :nclass])
    a2o = jnp.zeros((1, cp), jnp.float32).at[:, :nclass].set(a_out[:, nclass:])

    cp_parallel = pltpu.CompilerParams(dimension_semantics=("parallel",),
                                       vmem_limit_bytes=_VMEM_LIMIT)
    cp_arbitrary = pltpu.CompilerParams(dimension_semantics=("arbitrary",),
                                        vmem_limit_bytes=_VMEM_LIMIT)

    # ---- 1) per-head input projection --------------------------------------
    h_all = pl.pallas_call(
        _head_project_kernel,
        out_shape=jax.ShapeDtypeStruct((H, n_pad, fo), jnp.bfloat16),
        grid=(H,),
        in_specs=[pl.BlockSpec((n_pad, fin), lambda h: (0, 0)),
                  pl.BlockSpec((1, fin, fo), lambda h: (h, 0, 0))],
        out_specs=pl.BlockSpec((1, n_pad, fo), lambda h: (h, 0, 0)),
        compiler_params=cp_parallel,
    )(xp, w_heads)

    # ---- 2) hidden-layer attention (row-tiled, parallel row axis) -----------
    hidden_kernel = functools.partial(_hidden_attention_kernel,
                                      alpha=alpha, nheads=H)
    x2 = pl.pallas_call(
        hidden_kernel,
        out_shape=jax.ShapeDtypeStruct((H, n_pad, fo), jnp.bfloat16),
        grid=(num_blocks,),
        in_specs=[pl.BlockSpec((H, n_pad, fo), lambda i: (0, 0, 0)),   # resident
                  pl.BlockSpec((H, tile_r, fo), lambda i: (0, i, 0)),  # row block
                  pl.BlockSpec((H, 1, fo), lambda i: (0, 0, 0)),
                  pl.BlockSpec((H, 1, fo), lambda i: (0, 0, 0)),
                  pl.BlockSpec((tile_r, n_pad), lambda i: (i, 0))],    # streamed
        out_specs=pl.BlockSpec((H, tile_r, fo), lambda i: (0, i, 0)),
        compiler_params=cp_parallel,
    )(h_all, h_all, a1, a2, bias)

    # ---- 3) output projection (implicit concat, accumulate over heads) ------
    h2 = pl.pallas_call(
        _out_project_kernel,
        out_shape=jax.ShapeDtypeStruct((n_pad, cp), jnp.float32),
        grid=(H,),
        in_specs=[pl.BlockSpec((1, n_pad, fo), lambda h: (h, 0, 0)),
                  pl.BlockSpec((1, fo, cp), lambda h: (h, 0, 0))],
        out_specs=pl.BlockSpec((n_pad, cp), lambda h: (0, 0)),
        compiler_params=cp_arbitrary,
    )(x2, w_out_hm)

    # ---- 4) output-head attention + ELU + log_softmax (row-tiled) -----------
    out_kernel = functools.partial(_out_attention_kernel,
                                   alpha=alpha, nclass=nclass)
    logp = pl.pallas_call(
        out_kernel,
        out_shape=jax.ShapeDtypeStruct((n_pad, cp), jnp.float32),
        grid=(num_blocks,),
        in_specs=[pl.BlockSpec((n_pad, cp), lambda i: (0, 0)),         # resident
                  pl.BlockSpec((tile_r, cp), lambda i: (i, 0)),        # row block
                  pl.BlockSpec((1, cp), lambda i: (0, 0)),
                  pl.BlockSpec((1, cp), lambda i: (0, 0)),
                  pl.BlockSpec((tile_r, n_pad), lambda i: (i, 0))],    # streamed
        out_specs=pl.BlockSpec((tile_r, cp), lambda i: (i, 0)),        # lane-dense
        compiler_params=cp_parallel,
    )(h2, h2, a1o, a2o, bias)

    return logp[:N, :nclass]


# -------------------- pure-JAX reference (for validation) --------------------
def _ref_layer(x, adj, W, a, alpha):
    fo = W.shape[1]
    h = x @ W
    f1 = h @ a[:, :fo].T                  # (N, 1)
    f2 = a[:, fo:] @ h.T                  # (1, N)
    e = jnp.exp(-jnp.where(f1 + f2 > 0, f1 + f2, alpha * (f1 + f2)))
    e = jnp.where(adj > 0, e, 0.0)
    rowsum = jnp.sum(e, axis=1, keepdims=True)
    return (e @ h) / rowsum


def spgat_reference(params, x, adj, alpha):
    adj = adj.astype(jnp.float32)
    H = params["W_heads"].shape[0]
    heads = [
        _elu(_ref_layer(x, adj, params["W_heads"][h], params["a_heads"][h],
                        alpha))
        for h in range(H)
    ]
    x2 = jnp.concatenate(heads, axis=1)
    z = _elu(_ref_layer(x2, adj, params["W_out"], params["a_out"], alpha))
    return jax.nn.log_softmax(z, axis=1)


# ----------------------------- parameter setup -------------------------------
def init_params(key, nfeat, nhid, nclass, nheads):
    """Deterministic xavier_normal_(gain=1.414)-style init matching the module."""
    gain = 1.414
    ks = jax.random.split(key, 4)
    std_w = gain * (2.0 / (nfeat + nhid)) ** 0.5
    W_heads = std_w * jax.random.normal(ks[0], (nheads, nfeat, nhid), jnp.float32)
    std_a = gain * (2.0 / (1 + 2 * nhid)) ** 0.5
    a_heads = std_a * jax.random.normal(ks[1], (nheads, 1, 2 * nhid), jnp.float32)
    nin = nhid * nheads
    std_wo = gain * (2.0 / (nin + nclass)) ** 0.5
    W_out = std_wo * jax.random.normal(ks[2], (nin, nclass), jnp.float32)
    std_ao = gain * (2.0 / (1 + 2 * nclass)) ** 0.5
    a_out = std_ao * jax.random.normal(ks[3], (1, 2 * nclass), jnp.float32)
    return dict(W_heads=W_heads, a_heads=a_heads, W_out=W_out, a_out=a_out)


if __name__ == "__main__":
    # Small shapes, but chosen so the row-tiled grid path (R>1), row padding
    # (N not a multiple of 8) and class-lane padding are all exercised.
    N, nfeat, nhid, nclass, nheads = 50, 32, 8, 4, 4
    alpha = 0.2      # LeakyReLU negative slope
    dropout = 0.6    # unused in eval-mode forward

    key = jax.random.PRNGKey(0)
    kx, ka, kp = jax.random.split(key, 3)
    x = jax.random.normal(kx, (N, nfeat), jnp.float32)
    adj = (jax.random.uniform(ka, (N, N)) < 0.3).astype(jnp.float32)
    adj = jnp.maximum(adj, jnp.eye(N, dtype=jnp.float32))   # self loops

    params = init_params(kp, nfeat, nhid, nclass, nheads)

    out = spgat_forward(params, x, adj, alpha, tile_r=16)   # 4 row blocks
    out = jax.block_until_ready(out)

    ref = spgat_reference(params, x, adj, alpha)
    assert out.shape == (N, nclass)
    assert bool(jnp.all(jnp.isfinite(out)))
    # mixed bf16/f32 kernel vs. pure-f32 reference
    max_err = float(jnp.max(jnp.abs(out - ref)))
    assert jnp.allclose(out, ref, rtol=1e-1, atol=1e-1), max_err
    print("KERNEL_OK")
</pallas_src>

<mosaic_0001>
module attributes {stable_mosaic.version = 11 : i64} {
  func.func @_head_project_kernel(%arg0: i32, %arg1: memref<64x32xbf16, #tpu.memory_space<vmem>>, %arg2: memref<1x32x8xbf16, #tpu.memory_space<vmem>>, %arg3: memref<1x64x8xbf16, #tpu.memory_space<vmem>>) attributes {dimension_semantics = [#tpu.dimension_semantics<parallel>], iteration_bounds = array<i64: 4>, scalar_prefetch = 0 : i64, scratch_operands = 0 : i64, tpu.core_type = #tpu.core_type<tc>, window_params = [{pipeline_mode = #tpu.pipeline_mode<synchronous>, transform_indices = @transform_0, window_bounds = array<i64: 64, 32>}, {transform_indices = @transform_1, window_bounds = array<i64: 1, 32, 8>}, {transform_indices = @transform_2, window_bounds = array<i64: 1, 64, 8>}]} {
    %c0 = arith.constant 0 : index
    %c0_0 = arith.constant 0 : index
    %0 = vector.load %arg1[%c0, %c0_0] : memref<64x32xbf16, #tpu.memory_space<vmem>>, vector<64x32xbf16>
    %c0_1 = arith.constant 0 : index
    %c0_2 = arith.constant 0 : index
    %c0_3 = arith.constant 0 : index
    %1 = vector.load %arg2[%c0_1, %c0_2, %c0_3] : memref<1x32x8xbf16, #tpu.memory_space<vmem>>, vector<1x32x8xbf16>
    %2 = vector.shape_cast %1 : vector<1x32x8xbf16> to vector<32x8xbf16>
    %cst = arith.constant dense<0.000000e+00> : vector<64x8xf32>
    %3 = tpu.matmul %0, %2, %cst {dimension_numbers = #tpu.dot_dimension_numbers<[1], [0], [0], [1], [0, 0, 1, 1], [], []>} : vector<64x32xbf16>, vector<32x8xbf16>, vector<64x8xf32> -> vector<64x8xf32>
    %4 = arith.truncf %3 : vector<64x8xf32> to vector<64x8xbf16>
    %c0_4 = arith.constant 0 : index
    %c0_5 = arith.constant 0 : index
    %c0_6 = arith.constant 0 : index
    %5 = vector.load %arg3[%c0_4, %c0_5, %c0_6] : memref<1x64x8xbf16, #tpu.memory_space<vmem>>, vector<1x64x8xbf16>
    %6 = vector.shape_cast %5 : vector<1x64x8xbf16> to vector<64x8xbf16>
    %7 = vector.shape_cast %4 : vector<64x8xbf16> to vector<1x64x8xbf16>
    tpu.vector_store %arg3[%c0_4, %c0_5, %c0_6], %7 {strides = array<i32>} : memref<1x64x8xbf16, #tpu.memory_space<vmem>>, vector<1x64x8xbf16>,
    return
  }
  func.func @transform_0(%arg0: i32) -> (i32, i32) {
    %c0_i32 = arith.constant 0 : i32
    %c0_i32_0 = arith.constant 0 : i32
    %c0_i32_1 = arith.constant 0 : i32
    return %c0_i32, %c0_i32_0 : i32, i32
  }
  func.func @transform_1(%arg0: i32) -> (i32, i32, i32) {
    %c0_i32 = arith.constant 0 : i32
    %c0_i32_0 = arith.constant 0 : i32
    %c0_i32_1 = arith.constant 0 : i32
    return %arg0, %c0_i32, %c0_i32_0 : i32, i32, i32
  }
  func.func @transform_2(%arg0: i32) -> (i32, i32, i32) {
    %c0_i32 = arith.constant 0 : i32
    %c0_i32_0 = arith.constant 0 : i32
    %c0_i32_1 = arith.constant 0 : i32
    return %arg0, %c0_i32, %c0_i32_0 : i32, i32, i32
  }
}

</mosaic_0001>

<llo_original>
// kernel: tpu_custom_call.1
$region0: #{tpu_custom_call.1}
  #allocation0 [shape = 'u32[]', space=smem, size = 0x4, offset = 0x4, fixed_abs, tag = 'smem constant byte address 0x4 - core index']
  #allocation1 [shape = 'u32[144,128]{1,0:T(1,128)}', space=vmem, size = 0x12000, scoped, tag = 'internal scratch']
  %s0 = inlined_call_operand.vmem [shape: bf16[64,32], index: 0, kind: input, shape index: {}]
  %s1 = inlined_call_operand.vmem [shape: bf16[4,32,8], index: 1, kind: input, shape index: {}]
  %s2 = inlined_call_operand.vmem [shape: bf16[4,64,8], index: 2, kind: output, shape index: {}]
  %s3 = sld [smem:[#allocation0]]
  $region41: #{tpu_custom_call.1} parent=0
    _
  %s5 = ssub.s32 1, %s3
  %s6 = scalar_select 0, %s5, %s3
  loop: start=0, step=1, limit=6
  $region2: #{tpu_custom_call.1} parent=0 // loop_pre_header
    _
  $region3: #{tpu_custom_call.1} parent=0 // loop_header
    %s8 = sphi 0, %s12
    %p9 = scmp.ge.s32.totalorder %s8, 6
    %s16 = sphi 0, %s16
    %s18 = sphi 0, %s16
    %s19 = sphi 0, %s18
    %s33 = sphi 0, %s19
    %s39 = sphi 0, %s41
    %s42 = sphi 0, %s39
    %s43 = sphi 0, %s42
    %s59 = sphi 0, %s43
    %s65 = sphi 0, %s67
    %s68 = sphi 0, %s65
    %s69 = sphi 0, %s68
    %s85 = sphi 0, %s69
  $region4: #{tpu_custom_call.1} parent=0 // loop_header_branch
    %11 = sbr.rel (%p9) target = $region8
  $region5: #{tpu_custom_call.1} parent=0 // loop_body
    %s13 = ssub.s32 %s8, 1
    %s14 = ssub.s32 %s8, 2
    %s15 = sadd.s32 %s8, 1
    %s17 = sadd.s32 %s16, 1
    %p20 = scmp.eq.s32.totalorder %s8, 3
    %p21 = scmp.ne.s32.totalorder %s16, %s18
    %p22 = scmp.eq.s32.totalorder %s8, 0
    %p23 = por %p21, %p22
    %p24 = scmp.ne.s32.totalorder %s16, %s18
    %p25 = scmp.eq.s32.totalorder %s13, 3
    %p26 = por %p24, %p25
    %p27 = scmp.ne.s32.totalorder %s18, %s19
    %p28 = scmp.eq.s32.totalorder %s13, 0
    %p29 = por %p27, %p28
    %p30 = scmp.ne.s32.totalorder %s18, %s19
    %p31 = scmp.eq.s32.totalorder %s14, 3
    %p32 = por %p30, %p31
    %p34 = scmp.ne.s32.totalorder %s19, %s33
    %p35 = scmp.eq.s32.totalorder %s14, 0
    %p36 = por %p34, %p35
    %s37 = ssub.s32 %s8, %s15
    %p38 = scmp.eq.s32.totalorder %s37, 0
    %s40 = sadd.s32 %s39, 1
    %s41 = scalar_select %p38, %s39, %s40
    %p44 = pneg %p38
    %p45 = scmp.eq.s32.totalorder %s8, 3
    %p46 = por %p44, %p45
    %p47 = scmp.ne.s32.totalorder %s39, %s42
    %p48 = scmp.eq.s32.totalorder %s8, 0
    %p49 = por %p47, %p48
    %p50 = scmp.ne.s32.totalorder %s39, %s42
    %p51 = scmp.eq.s32.totalorder %s13, 3
    %p52 = por %p50, %p51
    %p53 = scmp.ne.s32.totalorder %s42, %s43
    %p54 = scmp.eq.s32.totalorder %s13, 0
    %p55 = por %p53, %p54
    %p56 = scmp.ne.s32.totalorder %s42, %s43
    %p57 = scmp.eq.s32.totalorder %s14, 3
    %p58 = por %p56, %p57
    %p60 = scmp.ne.s32.totalorder %s43, %s59
    %p61 = scmp.eq.s32.totalorder %s14, 0
    %p62 = por %p60, %p61
    %s63 = ssub.s32 %s8, %s15
    %p64 = scmp.eq.s32.totalorder %s63, 0
    %s66 = sadd.s32 %s65, 1
    %s67 = scalar_select %p64, %s65, %s66
    %p70 = pneg %p64
    %p71 = scmp.eq.s32.totalorder %s8, 3
    %p72 = por %p70, %p71
    %p73 = scmp.ne.s32.totalorder %s65, %s68
    %p74 = scmp.eq.s32.totalorder %s8, 0
    %p75 = por %p73, %p74
    %p76 = scmp.ne.s32.totalorder %s65, %s68
    %p77 = scmp.eq.s32.totalorder %s13, 3
    %p78 = por %p76, %p77
    %p79 = scmp.ne.s32.totalorder %s68, %s69
    %p80 = scmp.eq.s32.totalorder %s13, 0
    %p81 = por %p79, %p80
    %p82 = scmp.ne.s32.totalorder %s68, %s69
    %p83 = scmp.eq.s32.totalorder %s14, 3
    %p84 = por %p82, %p83
    %p86 = scmp.ne.s32.totalorder %s69, %s85
    %p87 = scmp.eq.s32.totalorder %s14, 0
    %p88 = por %p86, %p87
    %p89 = scmp.le.s32.totalorder 1, %s8
    %p90 = scmp.lt.s32.totalorder %s8, 5
    %p91 = pnand %p89, %p90
    %p92 = pneg %p91
    // Predicated region
    $region9: #{tpu_custom_call.1} parent=5 // pred_check
      _
    $region10: #{tpu_custom_call.1} parent=5 // pred_check_branch
      %94 = sbr.rel (%p91) target = $region12
    $region11: #{tpu_custom_call.1} parent=5 // pred_region
      %s95 = ssub.s32 %s8, 1
      // Predicated region
      $region13: #{tpu_custom_call.1} parent=11 // pred_check
        %p96 = pneg %p29
      $region14: #{tpu_custom_call.1} parent=11 // pred_check_branch
        %98 = sbr.rel (%p96) target = $region16
      $region15: #{tpu_custom_call.1} parent=11 // pred_region
        _
      $region16: #{tpu_custom_call.1} parent=11 // pred_fallthru
        _
    $region12: #{tpu_custom_call.1} parent=5 // pred_fallthru
      _
    %p99 = scmp.lt.s32.totalorder %s8, 4
    // Predicated region
    $region17: #{tpu_custom_call.1} parent=5 // pred_check
      %p100 = pneg %p99
    $region18: #{tpu_custom_call.1} parent=5 // pred_check_branch
      %102 = sbr.rel (%p100) target = $region20
    $region19: #{tpu_custom_call.1} parent=5 // pred_region
      // Predicated region
      $region21: #{tpu_custom_call.1} parent=19 // pred_check
        %p103 = pneg %p49
      $region22: #{tpu_custom_call.1} parent=19 // pred_check_branch
        %105 = sbr.rel (%p103) target = $region24
      $region23: #{tpu_custom_call.1} parent=19 // pred_region
        %p106 = scmp.lt.s32.totalorder %s8, 3
        %s107 = scalar_select %p106, %s8, 3
        %s108 = smul.addr %s107, 4
        %s109 = smul.addr %s108, 4
        %s110 = scalar_lea.vmem %s1, %s109
      $region24: #{tpu_custom_call.1} parent=19 // pred_fallthru
        _
    $region20: #{tpu_custom_call.1} parent=5 // pred_fallthru
      _
    %p111 = scmp.le.s32.totalorder 1, %s8
    %p112 = scmp.lt.s32.totalorder %s8, 5
    %p113 = pnand %p111, %p112
    %p114 = pneg %p113
    // Predicated region
    $region25: #{tpu_custom_call.1} parent=5 // pred_check
      _
    $region26: #{tpu_custom_call.1} parent=5 // pred_check_branch
      %116 = sbr.rel (%p113) target = $region28
    $region27: #{tpu_custom_call.1} parent=5 // pred_region
      %s117 = ssub.s32 %s8, 1
      %p118 = pneg %p29
      %p119 = pneg %p26
      %p120 = scmp.lt.s32.totalorder %s13, 3
      %s121 = scalar_select %p120, %s13, 3
      %s122 = smul.addr %s121, 4
      %s123 = smul.addr %s122, 4
      %s124 = scalar_lea.vmem %s1, %s123
      %p125 = pneg %p55
      %p126 = pneg %p52
      %p127 = pneg %p81
      %p128 = pneg %p78
      %p129 = scmp.lt.s32.totalorder %s13, 3
      %s130 = scalar_select %p129, %s13, 3
      %s131 = smul.addr %s130, 8
      %s132 = smul.addr %s131, 4
      %s133 = scalar_lea.vmem %s2, %s132
      %p134 = scmp.lt.s32.totalorder %s13, 3
      %s135 = scalar_select %p134, %s13, 3
      %s136 = smul.addr %s135, 4
      %s137 = smul.addr %s136, 4
      %s138 = scalar_lea.vmem %s1, %s137
      %p139 = scmp.lt.s32.totalorder %s13, 3
      %s140 = scalar_select %p139, %s13, 3
      %s141 = smul.addr %s140, 8
      %s142 = smul.addr %s141, 4
      %s143 = scalar_lea.vmem %s2, %s142
      %v145 = vld [vmem:[%s0] sm:$0xf]
      %v146 = vld [vmem:[%s0 + $0x4] sm:$0xf]
      %v147 = vld [vmem:[%s0 + $0x8] sm:$0xf]
      %v148 = vld [vmem:[%s0 + $0xc] sm:$0xf]
      %v149 = vld [vmem:[%s0 + $0x10] sm:$0xf]
      %v150 = vld [vmem:[%s0 + $0x14] sm:$0xf]
      %v151 = vld [vmem:[%s0 + $0x18] sm:$0xf]
      %v152 = vld [vmem:[%s0 + $0x1c] sm:$0xf]
      %v153 = vld [vmem:[%s138] sm:$0xf]
      %v154 = vld [vmem:[%s138 + $0x4] sm:$0xf]
      %v155 = vld [vmem:[%s138 + $0x8] sm:$0xf]
      %v156 = vld [vmem:[%s138 + $0xc] sm:$0xf]
      %v165 = vunpack.c.l.b16 %v145
      %v166 = vunpack.c.l.b16 %v146
      %v167 = vunpack.c.l.b16 %v147
      %v168 = vunpack.c.l.b16 %v148
      %v169 = vunpack.c.l.b16 %v149
      %v170 = vunpack.c.l.b16 %v150
      %v171 = vunpack.c.l.b16 %v151
      %v172 = vunpack.c.l.b16 %v152
      %v173 = vpack.c.b16 %v166, %v165
      %v174 = vpack.c.b16 %v168, %v167
      %v175 = vpack.c.b16 %v170, %v169
      %v176 = vpack.c.b16 %v172, %v171
      %v181 = vunpack.c.l.b16 %v153
      %v182 = vunpack.c.l.b16 %v154
      %v183 = vunpack.c.l.b16 %v155
      %v184 = vunpack.c.l.b16 %v156
      %v185 = vpack.c.b16 %v182, %v181
      %v186 = vpack.c.b16 %v184, %v183
      %vm189 = vcmask 261120
      %v191 = vsel %vm189, %v173, 0
      %v194 = vsel %vm189, %v174, 0
      %v197 = vsel %vm189, %v175, 0
      %v200 = vsel %vm189, %v176, 0
      %202 = vmatprep.subr.bf16.mxu0 0
      %203 = vmatpush1.bf16.msra.mxu0 0
      %204 = vmatprep.subr.bf16.mxu0 0
      %205 = vmatpush1.bf16.msra.mxu0 0
      %206 = vmatprep.subr.bf16.mxu0 0
      %207 = vmatpush1.bf16.msra.mxu0 0
      %208 = vmatprep.subr.bf16.mxu0 0
      %209 = vmatpush1.bf16.msra.mxu0 0
      %210 = vmatprep.subr.bf16.mxu0 0
      %211 = vmatpush1.bf16.msra.mxu0 0
      %212 = vmatprep.subr.bf16.mxu0 0
      %213 = vmatpush1.bf16.msra.mxu0 0
      %214 = vmatprep.subr.bf16.mxu0 0
      %215 = vmatpush1.bf16.msra.mxu0 %v186
      %216 = vmatprep.subr.bf16.mxu0 0
      %217 = vmatpush1.bf16.msra.mxu0 %v185
      %218 = vmatprep.subr.bf16.mxu0 0
      %219 = vmatpush2.bf16.msra.mxu0 0
      %220 = vmatprep.subr.bf16.mxu0 0
      %221 = vmatpush2.bf16.msra.mxu0 0
      %222 = vmatprep.subr.bf16.mxu0 0
      %223 = vmatpush2.bf16.msra.mxu0 0
      %224 = vmatprep.subr.bf16.mxu0 0
      %225 = vmatpush2.bf16.msra.mxu0 0
      %226 = vmatprep.subr.bf16.mxu0 0
      %227 = vmatpush2.bf16.msra.mxu0 0
      %228 = vmatprep.subr.bf16.mxu0 0
      %229 = vmatpush2.bf16.msra.mxu0 0
      %230 = vmatprep.subr.bf16.mxu0 0
      %231 = vmatpush2.bf16.msra.mxu0 0
      %232 = vmatprep.subr.bf16.mxu0 0
      %233 = vmatpush2.bf16.msra.mxu0 0
      %234 = vmatprep.mubr.bf16.mxu0 0
      %235 = vmatmul.mubr.bf16.gmra.mxu0 %v191
      %v236 = vpop.f32.mrf.mxu0
      %v237 = vadd.f32 0.0, %v236
      %v238 = vpop.f32.mrf.mxu0
      %v239 = vpop.f32.mrf.mxu0
      %v240 = vadd.f32 0.0, %v239
      %v241 = vpop.f32.mrf.mxu0
      %242 = vmatprep.mubr.bf16.mxu0 0
      %243 = vmatmul.mubr.bf16.gmra.mxu0 %v194
      %v244 = vpop.f32.mrf.mxu0
      %v245 = vadd.f32 0.0, %v244
      %v246 = vpop.f32.mrf.mxu0
      %v247 = vpop.f32.mrf.mxu0
      %v248 = vadd.f32 0.0, %v247
      %v249 = vpop.f32.mrf.mxu0
      %250 = vmatprep.mubr.bf16.mxu0 0
      %251 = vmatmul.mubr.bf16.gmra.mxu0 %v197
      %v252 = vpop.f32.mrf.mxu0
      %v253 = vadd.f32 0.0, %v252
      %v254 = vpop.f32.mrf.mxu0
      %v255 = vpop.f32.mrf.mxu0
      %v256 = vadd.f32 0.0, %v255
      %v257 = vpop.f32.mrf.mxu0
      %258 = vmatprep.mubr.bf16.mxu0 0
      %259 = vmatmul.mubr.bf16.gmra.mxu0 %v200
      %v260 = vpop.f32.mrf.mxu0
      %v261 = vadd.f32 0.0, %v260
      %v262 = vpop.f32.mrf.mxu0
      %v263 = vpop.f32.mrf.mxu0
      %v264 = vadd.f32 0.0, %v263
      %v265 = vpop.f32.mrf.mxu0
      %266 = vdwg.mxu0
      %v267 = vpack.c.bf16 %v240, %v237
      %v268 = vpack.c.bf16 %v248, %v245
      %v269 = vpack.c.bf16 %v256, %v253
      %v270 = vpack.c.bf16 %v264, %v261
      %v275 = vunpack.c.l.b16 %v267
      %v276 = vunpack.c.h.b16 %v267
      %v277 = vunpack.c.l.b16 %v268
      %v278 = vunpack.c.h.b16 %v268
      %v279 = vunpack.c.l.b16 %v269
      %v280 = vunpack.c.h.b16 %v269
      %v281 = vunpack.c.l.b16 %v270
      %v282 = vunpack.c.h.b16 %v270
      %v283 = vpack.c.b16 %v275, %v275
      %v284 = vpack.c.b16 %v276, %v276
      %v285 = vpack.c.b16 %v277, %v277
      %v286 = vpack.c.b16 %v278, %v278
      %v287 = vpack.c.b16 %v279, %v279
      %v288 = vpack.c.b16 %v280, %v280
      %v289 = vpack.c.b16 %v281, %v281
      %v290 = vpack.c.b16 %v282, %v282
      %vm299 = vcmask 60416
      %300 = vst.msk [vmem:[%s143] sm:$0xf] %vm299, %v283
      %301 = vst.msk [vmem:[%s143 + $0x4] sm:$0xf] %vm299, %v284
      %302 = vst.msk [vmem:[%s143 + $0x8] sm:$0xf] %vm299, %v285
      %303 = vst.msk [vmem:[%s143 + $0xc] sm:$0xf] %vm299, %v286
      %304 = vst.msk [vmem:[%s143 + $0x10] sm:$0xf] %vm299, %v287
      %305 = vst.msk [vmem:[%s143 + $0x14] sm:$0xf] %vm299, %v288
      %306 = vst.msk [vmem:[%s143 + $0x18] sm:$0xf] %vm299, %v289
      %307 = vst.msk [vmem:[%s143 + $0x1c] sm:$0xf] %vm299, %v290
      %p308 = scmp.lt.s32.totalorder %s13, 3
      %s309 = scalar_select %p308, %s13, 3
      %s310 = smul.addr %s309, 8
      %s311 = smul.addr %s310, 4
      %s312 = scalar_lea.vmem %s2, %s311
      // Predicated region
      $region29: #{tpu_custom_call.1} parent=27 // pred_check
        %p313 = pneg %p78
      $region30: #{tpu_custom_call.1} parent=27 // pred_check_branch
        %315 = sbr.rel (%p313) target = $region32
      $region31: #{tpu_custom_call.1} parent=27 // pred_region
        _
      $region32: #{tpu_custom_call.1} parent=27 // pred_fallthru
        _
    $region28: #{tpu_custom_call.1} parent=5 // pred_fallthru
      _
    %p316 = scmp.le.s32.totalorder 2, %s8
    // Predicated region
    $region33: #{tpu_custom_call.1} parent=5 // pred_check
      %p317 = pneg %p316
    $region34: #{tpu_custom_call.1} parent=5 // pred_check_branch
      %319 = sbr.rel (%p317) target = $region36
    $region35: #{tpu_custom_call.1} parent=5 // pred_region
      %s320 = ssub.s32 %s8, 2
      // Predicated region
      $region37: #{tpu_custom_call.1} parent=35 // pred_check
        %p321 = pneg %p84
      $region38: #{tpu_custom_call.1} parent=35 // pred_check_branch
        %323 = sbr.rel (%p321) target = $region40
      $region39: #{tpu_custom_call.1} parent=35 // pred_region
        %p324 = scmp.lt.s32.totalorder %s14, 3
        %s325 = scalar_select %p324, %s14, 3
        %s326 = smul.addr %s325, 8
        %s327 = smul.addr %s326, 4
        %s328 = scalar_lea.vmem %s2, %s327
      $region40: #{tpu_custom_call.1} parent=35 // pred_fallthru
        _
    $region36: #{tpu_custom_call.1} parent=5 // pred_fallthru
      _
  $region6: #{tpu_custom_call.1} parent=0 // loop_footer
    %s12 = sadd.s32 1, %s8
  $region7: #{tpu_custom_call.1} parent=0 // loop_footer_branch
    %7 = sbr.rel target = $region3
  $region8: #{tpu_custom_call.1} parent=0 // loop_exit
    _

</llo_original>
